<compile_context>
chip_gen: v7x
topology: tpu7x:2x2x1
jax: 0.10.0
libtpu: 0.0.40
codegen_flags: <defaults>
</compile_context>

<pallas_src>
import functools
import math

import jax
import jax.numpy as jnp
from jax.experimental import pallas as pl
from jax.experimental.pallas import tpu as pltpu


# ----------------------------------------------------------------------------
# Config mirroring the `args` dict consumed by MyNeuralNetwork.__init__
# ----------------------------------------------------------------------------
ARGS = {
    "inner_layer_activations": {"master": "relu", "store": "tanh", "warehouse": "elu"},
    "output_layer_activation": {"master": "sigmoid", "store": "softmax_1", "warehouse": None},
    "neurons_per_hidden_layer": {"master": [32, 32], "store": [32], "warehouse": []},
    "output_sizes": {"master": 8, "store": 4, "warehouse": 16},
}

IN_FEATURES = 32   # flattened input feature size fed to every head (LazyLinear infers this)
LANE = 128
SUBLANE = 8
OUT_LANES = 128    # lane-dense output slab width


# ----------------------------------------------------------------------------
# Fused kernel: all MLP heads + hardmax + ST-hardmax in one body
# ----------------------------------------------------------------------------
def fused_kernel(x_ref, x3_ref, w1_ref, b1_ref, w2_ref, b2_ref, w3_ref, b3_ref,
                 o_ref, hm_ref, st_ref, *, mh1, sh1, mh2, s_out, m_out):
    # ---------------- packed MLP heads: 3 matmuls total -----------------
    x = x_ref[...]                                              # (Bp, 32), loaded once

    # level 1 columns: [master hid1 | store hid1 | warehouse out]
    y1 = jnp.dot(x, w1_ref[...], preferred_element_type=jnp.float32) + b1_ref[...]
    c1 = jax.lax.broadcasted_iota(jnp.int32, y1.shape, 1)
    h1 = jnp.where(c1 < mh1, jnp.maximum(y1, 0.0),              # master inner: relu
         jnp.where(c1 < mh1 + sh1, jnp.tanh(y1), y1))           # store inner: tanh; warehouse: id

    # level 2 columns: [master hid2 | store logits | carried warehouse]
    y2 = jnp.dot(h1, w2_ref[...], preferred_element_type=jnp.float32) + b2_ref[...]
    c2 = jax.lax.broadcasted_iota(jnp.int32, y2.shape, 1)
    store_mask = (c2 >= mh2) & (c2 < mh2 + s_out)
    # softmax_1 over the store head's logits only (masked, whole-vreg ops)
    smax = jnp.max(jnp.where(store_mask, y2, -jnp.inf), axis=-1, keepdims=True)
    sexp = jnp.where(store_mask, jnp.exp(y2 - smax), 0.0)
    sprob = sexp / jnp.sum(sexp, axis=-1, keepdims=True)        # exact division
    h2 = jnp.where(c2 < mh2, jnp.maximum(y2, 0.0),              # master inner: relu
         jnp.where(store_mask, sprob, y2))                      # store out: softmax; carry: id

    # level 3 columns: [master out | carried store | carried warehouse | zeros..128]
    y3 = jnp.dot(h2, w3_ref[...], preferred_element_type=jnp.float32) + b3_ref[...]
    c3 = jax.lax.broadcasted_iota(jnp.int32, y3.shape, 1)
    slab = jnp.where(c3 < m_out, 1.0 / (1.0 + jnp.exp(-y3)), y3)  # master out: exact sigmoid
    o_ref[...] = slab.astype(o_ref.dtype)                       # ONE lane-dense store

    # ----------- hardmax + straight-through hardmax (torch dim=2) -------
    x3 = x3_ref[...]                                            # (B*S, C)
    ci = jax.lax.broadcasted_iota(jnp.int32, x3.shape, 1)
    mx = jnp.max(x3, axis=-1, keepdims=True)
    # first-index tie-break, matching torch.argmax
    first = jnp.min(jnp.where(x3 == mx, ci, x3.shape[1]), axis=-1, keepdims=True)
    onehot = ci == first
    # HardmaxLayer: one_hot(argmax(x, dim=2))  (emitted as f32 for the consumer)
    hm_ref[...] = jnp.where(onehot, 1.0, 0.0).astype(hm_ref.dtype)
    # STHardmaxFunction.forward: one_hot(argmax(x, dim=2)) * x
    # TODO(synk): the torch version's debug print()s and its custom backward
    # (hardtanh straight-through gradient) are not reproduced (forward only).
    st_ref[...] = jnp.where(onehot, x3, 0.0).astype(st_ref.dtype)


# ----------------------------------------------------------------------------
# Host-side weight packing (done once; feeds the 3-matmul kernel)
# ----------------------------------------------------------------------------
def pack_params(params):
    (mW1, mb1), (mW2, mb2), (mW3, mb3) = params["master"]       # 32->32->32->8
    (sW1, sb1), (sW2, sb2) = params["store"]                    # 32->32->4
    ((wW1, wb1),) = params["warehouse"]                         # 32->16

    MH1, SH1, WOUT = mW1.shape[1], sW1.shape[1], wW1.shape[1]
    MH2, SOUT = mW2.shape[1], sW2.shape[1]
    MOUT = mW3.shape[1]
    L1W = MH1 + SH1 + WOUT
    L2W = MH2 + SOUT + WOUT

    # level 1: column-concat every head's first Linear
    W1p = jnp.concatenate([mW1, sW1, wW1], axis=1)                       # (32, 80)
    b1p = jnp.concatenate([mb1, sb1, wb1]).reshape(1, -1)                # (1, 80)

    # level 2: block-diag(master L2, store L2) + identity carry of warehouse
    W2p = jnp.zeros((L1W, L2W), jnp.float32)
    W2p = W2p.at[:MH1, :MH2].set(mW2)
    W2p = W2p.at[MH1:MH1 + SH1, MH2:MH2 + SOUT].set(sW2)
    W2p = W2p.at[MH1 + SH1:, MH2 + SOUT:].set(jnp.eye(WOUT, dtype=jnp.float32))
    b2p = jnp.concatenate([mb2, sb2, jnp.zeros((WOUT,), jnp.float32)]).reshape(1, -1)

    # level 3: master L3 + identity carries, zero-padded to the 128-lane slab
    W3p = jnp.zeros((L2W, OUT_LANES), jnp.float32)
    W3p = W3p.at[:MH2, :MOUT].set(mW3)
    W3p = W3p.at[MH2:MH2 + SOUT, MOUT:MOUT + SOUT].set(jnp.eye(SOUT, dtype=jnp.float32))
    W3p = W3p.at[MH2 + SOUT:, MOUT + SOUT:MOUT + SOUT + WOUT].set(
        jnp.eye(WOUT, dtype=jnp.float32))
    b3p = jnp.zeros((1, OUT_LANES), jnp.float32).at[0, :MOUT].set(mb3)

    meta = dict(mh1=MH1, sh1=SH1, mh2=MH2, s_out=SOUT, m_out=MOUT, w_out=WOUT)
    return (W1p, b1p, W2p, b2p, W3p, b3p), meta


# ----------------------------------------------------------------------------
# Wrapper: one pallas_call for heads + hardmax layers
# ----------------------------------------------------------------------------
def my_neural_network_forward(params, x, x3d):
    packed, meta = pack_params(params)
    W1p, b1p, W2p, b2p, W3p, b3p = packed
    MOUT, SOUT, WOUT = meta["m_out"], meta["s_out"], meta["w_out"]

    B = x.shape[0]
    Bp = ((B + SUBLANE - 1) // SUBLANE) * SUBLANE
    xp = jnp.pad(x, ((0, Bp - B), (0, 0)))                       # sublane-pad batch once

    Bx, S, C = x3d.shape
    x3f = x3d.reshape(Bx * S, C)                                 # no -inf pad needed

    ins = [xp, x3f, W1p, b1p, W2p, b2p, W3p, b3p]
    in_specs = [pl.BlockSpec(a.shape, lambda i: (0, 0)) for a in ins]

    kernel = functools.partial(
        fused_kernel,
        mh1=meta["mh1"], sh1=meta["sh1"], mh2=meta["mh2"],
        s_out=SOUT, m_out=MOUT,
    )

    slab, hm, st = pl.pallas_call(
        kernel,
        out_shape=(
            jax.ShapeDtypeStruct((Bp, OUT_LANES), jnp.float32),
            jax.ShapeDtypeStruct((Bx * S, C), jnp.float32),
            jax.ShapeDtypeStruct((Bx * S, C), x3d.dtype),
        ),
        grid=(1,),
        in_specs=in_specs,
        out_specs=(
            pl.BlockSpec((Bp, OUT_LANES), lambda i: (0, 0)),
            pl.BlockSpec((Bx * S, C), lambda i: (0, 0)),
            pl.BlockSpec((Bx * S, C), lambda i: (0, 0)),
        ),
        compiler_params=pltpu.CompilerParams(dimension_semantics=("arbitrary",)),
    )(*ins)

    outs = {
        "master": slab[:B, 0:MOUT],
        "store": slab[:B, MOUT:MOUT + SOUT],
        "warehouse": slab[:B, MOUT + SOUT:MOUT + SOUT + WOUT],
    }
    return outs, hm.reshape(Bx, S, C), st.reshape(Bx, S, C)


# ----------------------------------------------------------------------------
# Parameter init (deterministic, PyTorch nn.Linear-style uniform(-k, k))
# ----------------------------------------------------------------------------
def init_params(args, in_features, key):
    params = {}
    for name in args["output_sizes"]:
        hidden = args["neurons_per_hidden_layer"][name]
        sizes = [in_features] + list(hidden) + [args["output_sizes"][name]]
        layers = []
        for fin, fout in zip(sizes[:-1], sizes[1:]):
            key, kw, kb = jax.random.split(key, 3)
            bound = 1.0 / math.sqrt(fin)
            w = jax.random.uniform(kw, (fin, fout), jnp.float32, -bound, bound)
            b = jax.random.uniform(kb, (fout,), jnp.float32, -bound, bound)
            layers.append((w, b))
        params[name] = layers
    return params


# ----------------------------------------------------------------------------
# Main
# ----------------------------------------------------------------------------
if __name__ == "__main__":
    key = jax.random.PRNGKey(0)
    k_x, k_x3d, k_p = jax.random.split(key, 3)

    # flattened features fed to the MLP heads
    x = jax.random.normal(k_x, (2, IN_FEATURES), jnp.float32)
    # 3-D tensor for the hardmax layers (argmax over dim=2)
    x3d = jax.random.normal(k_x3d, (2, 8, 16), jnp.float32)

    params = init_params(ARGS, IN_FEATURES, k_p)

    outs, hm, st = my_neural_network_forward(params, x, x3d)

    for v in outs.values():
        jax.block_until_ready(v)
    jax.block_until_ready(hm)
    jax.block_until_ready(st)

    # ---------------- sanity checks vs pure-JAX reference ----------------
    def ref_head(name, xin):
        inner = ARGS["inner_layer_activations"][name]
        outa = ARGS["output_layer_activation"][name]
        layers = params[name]
        y = xin
        for i, (w, b) in enumerate(layers):
            y = y @ w + b
            act = inner if i < len(layers) - 1 else outa
            if act == "relu":
                y = jnp.maximum(y, 0)
            elif act == "tanh":
                y = jnp.tanh(y)
            elif act == "elu":
                y = jnp.where(y > 0, y, jnp.expm1(y))
            elif act == "sigmoid":
                y = jax.nn.sigmoid(y)
            elif act == "softmax_1":
                y = jax.nn.softmax(y, axis=1)
        return y

    for name in ARGS["output_sizes"]:
        assert jnp.allclose(outs[name], ref_head(name, x), atol=1e-4), name

    idx = jnp.argmax(x3d, axis=2)
    ref_hm = jax.nn.one_hot(idx, x3d.shape[2], dtype=jnp.float32)
    assert jnp.array_equal(hm, ref_hm)
    assert jnp.allclose(st, ref_hm * x3d, atol=1e-6)

    print("KERNEL_OK")
</pallas_src>

<mosaic_0001>
module attributes {stable_mosaic.version = 11 : i64} {
  func.func @fused_kernel(%arg0: i32, %arg1: memref<8x32xf32, #tpu.memory_space<vmem>>, %arg2: memref<16x16xf32, #tpu.memory_space<vmem>>, %arg3: memref<32x80xf32, #tpu.memory_space<vmem>>, %arg4: memref<1x80xf32, #tpu.memory_space<vmem>>, %arg5: memref<80x52xf32, #tpu.memory_space<vmem>>, %arg6: memref<1x52xf32, #tpu.memory_space<vmem>>, %arg7: memref<52x128xf32, #tpu.memory_space<vmem>>, %arg8: memref<1x128xf32, #tpu.memory_space<vmem>>, %arg9: memref<8x128xf32, #tpu.memory_space<vmem>>, %arg10: memref<16x16xf32, #tpu.memory_space<vmem>>, %arg11: memref<16x16xf32, #tpu.memory_space<vmem>>) attributes {dimension_semantics = [#tpu.dimension_semantics<arbitrary>], iteration_bounds = array<i64: 1>, scalar_prefetch = 0 : i64, scratch_operands = 0 : i64, tpu.core_type = #tpu.core_type<tc>, window_params = [{pipeline_mode = #tpu.pipeline_mode<synchronous>, transform_indices = @transform_0, window_bounds = array<i64: 8, 32>}, {pipeline_mode = #tpu.pipeline_mode<synchronous>, transform_indices = @transform_1, window_bounds = array<i64: 16, 16>}, {pipeline_mode = #tpu.pipeline_mode<synchronous>, transform_indices = @transform_2, window_bounds = array<i64: 32, 80>}, {pipeline_mode = #tpu.pipeline_mode<synchronous>, transform_indices = @transform_3, window_bounds = array<i64: 1, 80>}, {pipeline_mode = #tpu.pipeline_mode<synchronous>, transform_indices = @transform_4, window_bounds = array<i64: 80, 52>}, {pipeline_mode = #tpu.pipeline_mode<synchronous>, transform_indices = @transform_5, window_bounds = array<i64: 1, 52>}, {pipeline_mode = #tpu.pipeline_mode<synchronous>, transform_indices = @transform_6, window_bounds = array<i64: 52, 128>}, {pipeline_mode = #tpu.pipeline_mode<synchronous>, transform_indices = @transform_7, window_bounds = array<i64: 1, 128>}, {pipeline_mode = #tpu.pipeline_mode<synchronous>, transform_indices = @transform_8, window_bounds = array<i64: 8, 128>}, {pipeline_mode = #tpu.pipeline_mode<synchronous>, transform_indices = @transform_9, window_bounds = array<i64: 16, 16>}, {pipeline_mode = #tpu.pipeline_mode<synchronous>, transform_indices = @transform_10, window_bounds = array<i64: 16, 16>}]} {
    %c0 = arith.constant 0 : index
    %c0_0 = arith.constant 0 : index
    %0 = vector.load %arg1[%c0, %c0_0] : memref<8x32xf32, #tpu.memory_space<vmem>>, vector<8x32xf32>
    %c0_1 = arith.constant 0 : index
    %c0_2 = arith.constant 0 : index
    %1 = vector.load %arg3[%c0_1, %c0_2] : memref<32x80xf32, #tpu.memory_space<vmem>>, vector<32x80xf32>
    %cst = arith.constant dense<0.000000e+00> : vector<8x80xf32>
    %2 = tpu.matmul %0, %1, %cst {dimension_numbers = #tpu.dot_dimension_numbers<[1], [0], [0], [1], [0, 0, 1, 1], [], []>} : vector<8x32xf32>, vector<32x80xf32>, vector<8x80xf32> -> vector<8x80xf32>
    %c0_3 = arith.constant 0 : index
    %c0_4 = arith.constant 0 : index
    %3 = vector.load %arg4[%c0_3, %c0_4] : memref<1x80xf32, #tpu.memory_space<vmem>>, vector<1x80xf32>
    %4 = vector.broadcast %3 : vector<1x80xf32> to vector<8x80xf32>
    %5 = arith.addf %2, %4 : vector<8x80xf32>
    %6 = tpu.iota {dimensions = array<i32: 1>} : vector<8x80xi32>
    %c32_i32 = arith.constant 32 : i32
    %7 = vector.broadcast %c32_i32 : i32 to vector<8x80xi32>
    %8 = arith.cmpi slt, %6, %7 : vector<8x80xi32>
    %cst_5 = arith.constant 0.000000e+00 : f32
    %9 = vector.broadcast %cst_5 : f32 to vector<8x80xf32>
    %10 = arith.maximumf %5, %9 : vector<8x80xf32>
    %c64_i32 = arith.constant 64 : i32
    %11 = vector.broadcast %c64_i32 : i32 to vector<8x80xi32>
    %12 = arith.cmpi slt, %6, %11 : vector<8x80xi32>
    %13 = math.tanh %5 : vector<8x80xf32>
    %14 = arith.select %12, %13, %5 : vector<8x80xi1>, vector<8x80xf32>
    %15 = arith.select %8, %10, %14 : vector<8x80xi1>, vector<8x80xf32>
    %c0_6 = arith.constant 0 : index
    %c0_7 = arith.constant 0 : index
    %16 = vector.load %arg5[%c0_6, %c0_7] : memref<80x52xf32, #tpu.memory_space<vmem>>, vector<80x52xf32>
    %cst_8 = arith.constant dense<0.000000e+00> : vector<8x52xf32>
    %17 = tpu.matmul %15, %16, %cst_8 {dimension_numbers = #tpu.dot_dimension_numbers<[1], [0], [0], [1], [0, 0, 1, 1], [], []>} : vector<8x80xf32>, vector<80x52xf32>, vector<8x52xf32> -> vector<8x52xf32>
    %c0_9 = arith.constant 0 : index
    %c0_10 = arith.constant 0 : index
    %18 = vector.load %arg6[%c0_9, %c0_10] : memref<1x52xf32, #tpu.memory_space<vmem>>, vector<1x52xf32>
    %19 = vector.broadcast %18 : vector<1x52xf32> to vector<8x52xf32>
    %20 = arith.addf %17, %19 : vector<8x52xf32>
    %21 = tpu.iota {dimensions = array<i32: 1>} : vector<8x52xi32>
    %c32_i32_11 = arith.constant 32 : i32
    %22 = vector.broadcast %c32_i32_11 : i32 to vector<8x52xi32>
    %23 = arith.cmpi sge, %21, %22 : vector<8x52xi32>
    %c36_i32 = arith.constant 36 : i32
    %24 = vector.broadcast %c36_i32 : i32 to vector<8x52xi32>
    %25 = arith.cmpi slt, %21, %24 : vector<8x52xi32>
    %26 = arith.andi %23, %25 : vector<8x52xi1>
    %cst_12 = arith.constant 0xFF800000 : f32
    %27 = vector.broadcast %cst_12 : f32 to vector<8x52xf32>
    %28 = arith.select %26, %20, %27 : vector<8x52xi1>, vector<8x52xf32>
    %cst_13 = arith.constant dense<0xFF800000> : vector<8xf32>
    %29 = vector.multi_reduction <maximumf>, %28, %cst_13 [1] : vector<8x52xf32> to vector<8xf32>
    %30 = vector.shape_cast %29 : vector<8xf32> to vector<8x1xf32>
    %31 = vector.broadcast %30 : vector<8x1xf32> to vector<8x52xf32>
    %32 = arith.subf %20, %31 : vector<8x52xf32>
    %33 = math.exp %32 : vector<8x52xf32>
    %cst_14 = arith.constant 0.000000e+00 : f32
    %34 = vector.broadcast %cst_14 : f32 to vector<8x52xf32>
    %35 = arith.select %26, %33, %34 : vector<8x52xi1>, vector<8x52xf32>
    %cst_15 = arith.constant dense<0.000000e+00> : vector<8xf32>
    %36 = vector.multi_reduction <add>, %35, %cst_15 [1] : vector<8x52xf32> to vector<8xf32>
    %37 = vector.shape_cast %36 : vector<8xf32> to vector<8x1xf32>
    %38 = vector.broadcast %37 : vector<8x1xf32> to vector<8x52xf32>
    %39 = arith.divf %35, %38 : vector<8x52xf32>
    %c32_i32_16 = arith.constant 32 : i32
    %40 = vector.broadcast %c32_i32_16 : i32 to vector<8x52xi32>
    %41 = arith.cmpi slt, %21, %40 : vector<8x52xi32>
    %cst_17 = arith.constant 0.000000e+00 : f32
    %42 = vector.broadcast %cst_17 : f32 to vector<8x52xf32>
    %43 = arith.maximumf %20, %42 : vector<8x52xf32>
    %44 = arith.select %26, %39, %20 : vector<8x52xi1>, vector<8x52xf32>
    %45 = arith.select %41, %43, %44 : vector<8x52xi1>, vector<8x52xf32>
    %c0_18 = arith.constant 0 : index
    %c0_19 = arith.constant 0 : index
    %46 = vector.load %arg7[%c0_18, %c0_19] : memref<52x128xf32, #tpu.memory_space<vmem>>, vector<52x128xf32>
    %cst_20 = arith.constant dense<0.000000e+00> : vector<8x128xf32>
    %47 = tpu.matmul %45, %46, %cst_20 {dimension_numbers = #tpu.dot_dimension_numbers<[1], [0], [0], [1], [0, 0, 1, 1], [], []>} : vector<8x52xf32>, vector<52x128xf32>, vector<8x128xf32> -> vector<8x128xf32>
    %c0_21 = arith.constant 0 : index
    %c0_22 = arith.constant 0 : index
    %48 = vector.load %arg8[%c0_21, %c0_22] : memref<1x128xf32, #tpu.memory_space<vmem>>, vector<1x128xf32>
    %49 = vector.broadcast %48 : vector<1x128xf32> to vector<8x128xf32>
    %50 = arith.addf %47, %49 : vector<8x128xf32>
    %51 = tpu.iota {dimensions = array<i32: 1>} : vector<8x128xi32>
    %c8_i32 = arith.constant 8 : i32
    %52 = vector.broadcast %c8_i32 : i32 to vector<8x128xi32>
    %53 = arith.cmpi slt, %51, %52 : vector<8x128xi32>
    %cst_23 = arith.constant 0.000000e+00 : f32
    %54 = vector.broadcast %cst_23 : f32 to vector<8x128xf32>
    %55 = arith.subf %54, %50 : vector<8x128xf32>
    %56 = math.exp %55 : vector<8x128xf32>
    %cst_24 = arith.constant 1.000000e+00 : f32
    %57 = vector.broadcast %cst_24 : f32 to vector<8x128xf32>
    %58 = arith.addf %57, %56 : vector<8x128xf32>
    %cst_25 = arith.constant 1.000000e+00 : f32
    %59 = vector.broadcast %cst_25 : f32 to vector<8x128xf32>
    %60 = arith.divf %59, %58 : vector<8x128xf32>
    %61 = arith.select %53, %60, %50 : vector<8x128xi1>, vector<8x128xf32>
    %c0_26 = arith.constant 0 : index
    %c0_27 = arith.constant 0 : index
    %62 = vector.load %arg9[%c0_26, %c0_27] : memref<8x128xf32, #tpu.memory_space<vmem>>, vector<8x128xf32>
    tpu.vector_store %arg9[%c0_26, %c0_27], %61 {strides = array<i32>} : memref<8x128xf32, #tpu.memory_space<vmem>>, vector<8x128xf32>,
    %c0_28 = arith.constant 0 : index
    %c0_29 = arith.constant 0 : index
    %63 = vector.load %arg2[%c0_28, %c0_29] : memref<16x16xf32, #tpu.memory_space<vmem>>, vector<16x16xf32>
    %64 = tpu.iota {dimensions = array<i32: 1>} : vector<16x16xi32>
    %cst_30 = arith.constant dense<0xFF800000> : vector<16xf32>
    %65 = vector.multi_reduction <maximumf>, %63, %cst_30 [1] : vector<16x16xf32> to vector<16xf32>
    %66 = vector.shape_cast %65 : vector<16xf32> to vector<16x1xf32>
    %67 = vector.broadcast %66 : vector<16x1xf32> to vector<16x16xf32>
    %68 = arith.cmpf oeq, %63, %67 : vector<16x16xf32>
    %c16_i32 = arith.constant 16 : i32
    %69 = vector.broadcast %c16_i32 : i32 to vector<16x16xi32>
    %70 = arith.select %68, %64, %69 : vector<16x16xi1>, vector<16x16xi32>
    %cst_31 = arith.constant dense<2147483647> : vector<16xi32>
    %71 = vector.multi_reduction <minsi>, %70, %cst_31 [1] : vector<16x16xi32> to vector<16xi32>
    %72 = vector.shape_cast %71 : vector<16xi32> to vector<16x1xi32>
    %73 = vector.broadcast %72 : vector<16x1xi32> to vector<16x16xi32>
    %74 = arith.cmpi eq, %64, %73 : vector<16x16xi32>
    %cst_32 = arith.constant 1.000000e+00 : f32
    %cst_33 = arith.constant 0.000000e+00 : f32
    %75 = vector.broadcast %cst_32 : f32 to vector<16x16xf32>
    %76 = vector.broadcast %cst_33 : f32 to vector<16x16xf32>
    %77 = arith.select %74, %75, %76 : vector<16x16xi1>, vector<16x16xf32>
    %c0_34 = arith.constant 0 : index
    %c0_35 = arith.constant 0 : index
    %78 = vector.load %arg10[%c0_34, %c0_35] : memref<16x16xf32, #tpu.memory_space<vmem>>, vector<16x16xf32>
    tpu.vector_store %arg10[%c0_34, %c0_35], %77 {strides = array<i32>} : memref<16x16xf32, #tpu.memory_space<vmem>>, vector<16x16xf32>,
    %cst_36 = arith.constant 0.000000e+00 : f32
    %79 = vector.broadcast %cst_36 : f32 to vector<16x16xf32>
    %80 = arith.select %74, %63, %79 : vector<16x16xi1>, vector<16x16xf32>
    %c0_37 = arith.constant 0 : index
    %c0_38 = arith.constant 0 : index
    %81 = vector.load %arg11[%c0_37, %c0_38] : memref<16x16xf32, #tpu.memory_space<vmem>>, vector<16x16xf32>
    tpu.vector_store %arg11[%c0_37, %c0_38], %80 {strides = array<i32>} : memref<16x16xf32, #tpu.memory_space<vmem>>, vector<16x16xf32>,
    return
  }
  func.func @transform_0(%arg0: i32) -> (i32, i32) {
    %c0_i32 = arith.constant 0 : i32
    %c0_i32_0 = arith.constant 0 : i32
    %c0_i32_1 = arith.constant 0 : i32
    return %c0_i32, %c0_i32_0 : i32, i32
  }
  func.func @transform_1(%arg0: i32) -> (i32, i32) {
    %c0_i32 = arith.constant 0 : i32
    %c0_i32_0 = arith.constant 0 : i32
    %c0_i32_1 = arith.constant 0 : i32
    return %c0_i32, %c0_i32_0 : i32, i32
  }
  func.func @transform_2(%arg0: i32) -> (i32, i32) {
    %c0_i32 = arith.constant 0 : i32
    %c0_i32_0 = arith.constant 0 : i32
    %c0_i32_1 = arith.constant 0 : i32
    return %c0_i32, %c0_i32_0 : i32, i32
  }
  func.func @transform_3(%arg0: i32) -> (i32, i32) {
    %c0_i32 = arith.constant 0 : i32
    %c0_i32_0 = arith.constant 0 : i32
    %c0_i32_1 = arith.constant 0 : i32
    return %c0_i32, %c0_i32_0 : i32, i32
  }
  func.func @transform_4(%arg0: i32) -> (i32, i32) {
    %c0_i32 = arith.constant 0 : i32
    %c0_i32_0 = arith.constant 0 : i32
    %c0_i32_1 = arith.constant 0 : i32
    return %c0_i32, %c0_i32_0 : i32, i32
  }
  func.func @transform_5(%arg0: i32) -> (i32, i32) {
    %c0_i32 = arith.constant 0 : i32
    %c0_i32_0 = arith.constant 0 : i32
    %c0_i32_1 = arith.constant 0 : i32
    return %c0_i32, %c0_i32_0 : i32, i32
  }
  func.func @transform_6(%arg0: i32) -> (i32, i32) {
    %c0_i32 = arith.constant 0 : i32
    %c0_i32_0 = arith.constant 0 : i32
    %c0_i32_1 = arith.constant 0 : i32
    return %c0_i32, %c0_i32_0 : i32, i32
  }
  func.func @transform_7(%arg0: i32) -> (i32, i32) {
    %c0_i32 = arith.constant 0 : i32
    %c0_i32_0 = arith.constant 0 : i32
    %c0_i32_1 = arith.constant 0 : i32
    return %c0_i32, %c0_i32_0 : i32, i32
  }
  func.func @transform_8(%arg0: i32) -> (i32, i32) {
    %c0_i32 = arith.constant 0 : i32
    %c0_i32_0 = arith.constant 0 : i32
    %c0_i32_1 = arith.constant 0 : i32
    return %c0_i32, %c0_i32_0 : i32, i32
  }
  func.func @transform_9(%arg0: i32) -> (i32, i32) {
    %c0_i32 = arith.constant 0 : i32
    %c0_i32_0 = arith.constant 0 : i32
    %c0_i32_1 = arith.constant 0 : i32
    return %c0_i32, %c0_i32_0 : i32, i32
  }
  func.func @transform_10(%arg0: i32) -> (i32, i32) {
    %c0_i32 = arith.constant 0 : i32
    %c0_i32_0 = arith.constant 0 : i32
    %c0_i32_1 = arith.constant 0 : i32
    return %c0_i32, %c0_i32_0 : i32, i32
  }
}

</mosaic_0001>

<llo_original>
// kernel: tpu_custom_call.1
$region0: #{tpu_custom_call.1}
  #allocation0 [shape = 'u32[]', space=smem, size = 0x4, offset = 0x4, fixed_abs, tag = 'smem constant byte address 0x4 - core index']
  #allocation1 [shape = 'u32[144,128]{1,0:T(1,128)}', space=vmem, size = 0x12000, scoped, tag = 'internal scratch']
  %s0 = inlined_call_operand.vmem [shape: f32[8,32], index: 0, kind: input, shape index: {}]
  %s1 = inlined_call_operand.vmem [shape: f32[16,16], index: 1, kind: input, shape index: {}]
  %s2 = inlined_call_operand.vmem [shape: f32[32,80], index: 2, kind: input, shape index: {}]
  %s3 = inlined_call_operand.vmem [shape: f32[1,80], index: 3, kind: input, shape index: {}]
  %s4 = inlined_call_operand.vmem [shape: f32[80,52], index: 4, kind: input, shape index: {}]
  %s5 = inlined_call_operand.vmem [shape: f32[1,52], index: 5, kind: input, shape index: {}]
  %s6 = inlined_call_operand.vmem [shape: f32[52,128], index: 6, kind: input, shape index: {}]
  %s7 = inlined_call_operand.vmem [shape: f32[1,128], index: 7, kind: input, shape index: {}]
  %s8 = inlined_call_operand.hbm [shape: f32[8,128], index: 8, kind: output, shape index: {0}]
  %s9 = inlined_call_operand.hbm [shape: f32[16,16], index: 9, kind: output, shape index: {1}]
  %s10 = inlined_call_operand.hbm [shape: f32[16,16], index: 10, kind: output, shape index: {2}]
  %11 = xla_tuple %s8, %s9, %s10
  %s12 = sld [smem:[#allocation0]]
  $region58: #{tpu_custom_call.1} parent=0
    _
  %s14 = ssub.s32 1, %s12
  %s15 = scalar_select 0, %s14, %s12
  $region1: #{tpu_custom_call.1} parent=0
    #allocation2 [shape = 'u8[4096]{0}', space=vmem, size = 0x1000, scoped, tag = 'output window, operand 0, single buffered']
    #allocation3 [shape = 's32[1]{0}', space=sflag, size = 0x4, scoped, tag = 'scoped memory for tpu_custom_call.1']
    #allocation4 [shape = 'u8[8192]{0}', space=vmem, size = 0x2000, scoped, tag = 'output window, operand 1, single buffered']
    #allocation5 [shape = 's32[1]{0}', space=sflag, size = 0x4, scoped, tag = 'scoped memory for tpu_custom_call.1']
    #allocation6 [shape = 'u8[8192]{0}', space=vmem, size = 0x2000, scoped, tag = 'output window, operand 2, single buffered']
    %16 = vsyncpa [#allocation3], 0
    %17 = vsyncpa [#allocation5], 0
    // Predicated region
    $region2: #{tpu_custom_call.1} parent=1 // pred_check
      _
    $region3: #{tpu_custom_call.1} parent=1 // pred_check_branch
      %19 = sbr.rel (0) target = $region5
    $region4: #{tpu_custom_call.1} parent=1 // pred_region
      _
    $region5: #{tpu_custom_call.1} parent=1 // pred_fallthru
      _
    // Predicated region
    $region6: #{tpu_custom_call.1} parent=1 // pred_check
      _
    $region7: #{tpu_custom_call.1} parent=1 // pred_check_branch
      %21 = sbr.rel (0) target = $region9
    $region8: #{tpu_custom_call.1} parent=1 // pred_region
      _
    $region9: #{tpu_custom_call.1} parent=1 // pred_fallthru
      _
    // Predicated region
    $region10: #{tpu_custom_call.1} parent=1 // pred_check
      _
    $region11: #{tpu_custom_call.1} parent=1 // pred_check_branch
      %23 = sbr.rel (0) target = $region13
    $region12: #{tpu_custom_call.1} parent=1 // pred_region
      _
    $region13: #{tpu_custom_call.1} parent=1 // pred_fallthru
      _
    // Predicated region
    $region14: #{tpu_custom_call.1} parent=1 // pred_check
      _
    $region15: #{tpu_custom_call.1} parent=1 // pred_check_branch
      %25 = sbr.rel (0) target = $region17
    $region16: #{tpu_custom_call.1} parent=1 // pred_region
      _
    $region17: #{tpu_custom_call.1} parent=1 // pred_fallthru
      _
    // Predicated region
    $region18: #{tpu_custom_call.1} parent=1 // pred_check
      _
    $region19: #{tpu_custom_call.1} parent=1 // pred_check_branch
      %27 = sbr.rel (0) target = $region21
    $region20: #{tpu_custom_call.1} parent=1 // pred_region
      _
    $region21: #{tpu_custom_call.1} parent=1 // pred_fallthru
      _
    // Predicated region
    $region22: #{tpu_custom_call.1} parent=1 // pred_check
      _
    $region23: #{tpu_custom_call.1} parent=1 // pred_check_branch
      %29 = sbr.rel (0) target = $region25
    $region24: #{tpu_custom_call.1} parent=1 // pred_region
      _
    $region25: #{tpu_custom_call.1} parent=1 // pred_fallthru
      _
    // Predicated region
    $region26: #{tpu_custom_call.1} parent=1 // pred_check
      _
    $region27: #{tpu_custom_call.1} parent=1 // pred_check_branch
      %31 = sbr.rel (0) target = $region29
    $region28: #{tpu_custom_call.1} parent=1 // pred_region
      _
    $region29: #{tpu_custom_call.1} parent=1 // pred_fallthru
      _
    // Predicated region
    $region30: #{tpu_custom_call.1} parent=1 // pred_check
      _
    $region31: #{tpu_custom_call.1} parent=1 // pred_check_branch
      %33 = sbr.rel (0) target = $region33
    $region32: #{tpu_custom_call.1} parent=1 // pred_region
      _
    $region33: #{tpu_custom_call.1} parent=1 // pred_fallthru
      _
    %v34 = vld [vmem:[%s0] sm:$0xff]
    %v35 = vld [vmem:[%s2] sm:$0xff]
    %v36 = vld [vmem:[%s2 + $0x8] sm:$0xff]
    %v37 = vld [vmem:[%s2 + $0x10] sm:$0xff]
    %v38 = vld [vmem:[%s2 + $0x18] sm:$0xff]
    %v39 = vld [vmem:[%s3] sm:$0x1]
    %v41 = vlaneseq
    %v42 = vshrl.u32 %v41, 7
    %v43 = vsub.s32 0, %v42
    %v44 = vrot.slane %v39, %v43
    %vm46 = vcmask 261120
    %v48 = vsel %vm46, %v34, 0
    %50 = vmatprep.subr.mxu0 0.0
    %51 = vmatpush1.msra.mxu0 %v35
    %52 = vmatprep.subr.mxu0 0.0
    %53 = vmatpush1.msra.mxu0 %v36
    %54 = vmatprep.subr.mxu0 0.0
    %55 = vmatpush1.msra.mxu0 %v37
    %56 = vmatprep.subr.mxu0 0.0
    %57 = vmatpush1.msra.mxu0 %v38
    %58 = vmatprep.subr.mxu0 0.0
    %59 = vmatpush1.msra.mxu0 0.0
    %60 = vmatprep.subr.mxu0 0.0
    %61 = vmatpush1.msra.mxu0 0.0
    %62 = vmatprep.subr.mxu0 0.0
    %63 = vmatpush1.msra.mxu0 0.0
    %64 = vmatprep.subr.mxu0 0.0
    %65 = vmatpush1.msra.mxu0 0.0
    %66 = vmatprep.subr.mxu0 0.0
    %67 = vmatpush1.msra.mxu0 0.0
    %68 = vmatprep.subr.mxu0 0.0
    %69 = vmatpush1.msra.mxu0 0.0
    %70 = vmatprep.subr.mxu0 0.0
    %71 = vmatpush1.msra.mxu0 0.0
    %72 = vmatprep.subr.mxu0 0.0
    %73 = vmatpush1.msra.mxu0 0.0
    %74 = vmatprep.subr.mxu0 0.0
    %75 = vmatpush1.msra.mxu0 0.0
    %76 = vmatprep.subr.mxu0 0.0
    %77 = vmatpush1.msra.mxu0 0.0
    %78 = vmatprep.subr.mxu0 0.0
    %79 = vmatpush1.msra.mxu0 0.0
    %80 = vmatprep.subr.mxu0 0.0
    %81 = vmatpush1.msra.mxu0 0.0
    %82 = vmatprep.subr.mxu0 0.0
    %83 = vmatpush1.msra.mxu0 0.0
    %84 = vmatprep.subr.mxu0 0.0
    %85 = vmatpush1.msra.mxu0 0.0
    %86 = vmatprep.subr.mxu0 0.0
    %87 = vmatpush1.msra.mxu0 0.0
    %88 = vmatprep.subr.mxu0 0.0
    %89 = vmatpush1.msra.mxu0 0.0
    %90 = vmatprep.subr.mxu0 0.0
    %91 = vmatpush1.msra.mxu0 0.0
    %92 = vmatprep.subr.mxu0 0.0
    %93 = vmatpush1.msra.mxu0 0.0
    %94 = vmatprep.subr.mxu0 0.0
    %95 = vmatpush1.msra.mxu0 0.0
    %96 = vmatprep.subr.mxu0 0.0
    %97 = vmatpush1.msra.mxu0 0.0
    %98 = vmatprep.subr.mxu0 0.0
    %99 = vmatpush1.msra.mxu0 0.0
    %100 = vmatprep.subr.mxu0 0.0
    %101 = vmatpush1.msra.mxu0 0.0
    %102 = vmatprep.subr.mxu0 0.0
    %103 = vmatpush1.msra.mxu0 0.0
    %104 = vmatprep.subr.mxu0 0.0
    %105 = vmatpush1.msra.mxu0 0.0
    %106 = vmatprep.subr.mxu0 0.0
    %107 = vmatpush1.msra.mxu0 0.0
    %108 = vmatprep.subr.mxu0 0.0
    %109 = vmatpush1.msra.mxu0 0.0
    %110 = vmatprep.subr.mxu0 0.0
    %111 = vmatpush1.msra.mxu0 0.0
    %112 = vmatprep.subr.mxu0 0.0
    %113 = vmatpush1.msra.mxu0 0.0
    %114 = vmatprep.mubr.f32.mxu0 0.0
    %115 = vmatmul.mubr.f32.gmra.mrb[0].mxu0 %v48
    %v116 = vpop.f32.mrb[0].mxu0
    %v117 = vadd.f32 %v44, %v116
    %v118 = vpop.f32.mrb[0].mxu0
    %119 = vdwg.mxu0
    %v120 = vlaneseq
    %v121 = vand.u32 %v120, 127
    %vm122 = vcmp.lt.s32.totalorder %v121, 32
    %v123 = vmax.f32 %v117, 0.0
    %vm124 = vcmp.lt.s32.totalorder %v121, 64
    %v125 = vtanh.pop %v117
    %v126 = vsel %vm124, %v125, %v117
    %v127 = vsel %vm122, %v123, %v126
    %v128 = vld [vmem:[%s4] sm:$0xff]
    %v129 = vld [vmem:[%s4 + $0x8] sm:$0xff]
    %v130 = vld [vmem:[%s4 + $0x10] sm:$0xff]
    %v131 = vld [vmem:[%s4 + $0x18] sm:$0xff]
    %v132 = vld [vmem:[%s4 + $0x20] sm:$0xff]
    %v133 = vld [vmem:[%s4 + $0x28] sm:$0xff]
    %v134 = vld [vmem:[%s4 + $0x30] sm:$0xff]
    %v135 = vld [vmem:[%s4 + $0x38] sm:$0xff]
    %v136 = vld [vmem:[%s4 + $0x40] sm:$0xff]
    %v137 = vld [vmem:[%s4 + $0x48] sm:$0xff]
    %v138 = vld [vmem:[%s5] sm:$0x1]
    %v140 = vlaneseq
    %v141 = vshrl.u32 %v140, 7
    %v142 = vsub.s32 0, %v141
    %v143 = vrot.slane %v138, %v142
    %vm145 = vcmask 654336
    %v147 = vsel %vm145, %v127, 0
    %149 = vmatprep.subr.mxu0 0.0
    %150 = vmatpush1.msra.mxu0 %v128
    %151 = vmatprep.subr.mxu0 0.0
    %152 = vmatpush1.msra.mxu0 %v129
    %153 = vmatprep.subr.mxu0 0.0
    %154 = vmatpush1.msra.mxu0 %v130
    %155 = vmatprep.subr.mxu0 0.0
    %156 = vmatpush1.msra.mxu0 %v131
    %157 = vmatprep.subr.mxu0 0.0
    %158 = vmatpush1.msra.mxu0 %v132
    %159 = vmatprep.subr.mxu0 0.0
    %160 = vmatpush1.msra.mxu0 %v133
    %161 = vmatprep.subr.mxu0 0.0
    %162 = vmatpush1.msra.mxu0 %v134
    %163 = vmatprep.subr.mxu0 0.0
    %164 = vmatpush1.msra.mxu0 %v135
    %165 = vmatprep.subr.mxu0 0.0
    %166 = vmatpush1.msra.mxu0 %v136
    %167 = vmatprep.subr.mxu0 0.0
    %168 = vmatpush1.msra.mxu0 %v137
    %169 = vmatprep.subr.mxu0 0.0
    %170 = vmatpush1.msra.mxu0 0.0
    %171 = vmatprep.subr.mxu0 0.0
    %172 = vmatpush1.msra.mxu0 0.0
    %173 = vmatprep.subr.mxu0 0.0
    %174 = vmatpush1.msra.mxu0 0.0
    %175 = vmatprep.subr.mxu0 0.0
    %176 = vmatpush1.msra.mxu0 0.0
    %177 = vmatprep.subr.mxu0 0.0
    %178 = vmatpush1.msra.mxu0 0.0
    %179 = vmatprep.subr.mxu0 0.0
    %180 = vmatpush1.msra.mxu0 0.0
    %181 = vmatprep.subr.mxu0 0.0
    %182 = vmatpush1.msra.mxu0 0.0
    %183 = vmatprep.subr.mxu0 0.0
    %184 = vmatpush1.msra.mxu0 0.0
    %185 = vmatprep.subr.mxu0 0.0
    %186 = vmatpush1.msra.mxu0 0.0
    %187 = vmatprep.subr.mxu0 0.0
    %188 = vmatpush1.msra.mxu0 0.0
    %189 = vmatprep.subr.mxu0 0.0
    %190 = vmatpush1.msra.mxu0 0.0
    %191 = vmatprep.subr.mxu0 0.0
    %192 = vmatpush1.msra.mxu0 0.0
    %193 = vmatprep.subr.mxu0 0.0
    %194 = vmatpush1.msra.mxu0 0.0
    %195 = vmatprep.subr.mxu0 0.0
    %196 = vmatpush1.msra.mxu0 0.0
    %197 = vmatprep.subr.mxu0 0.0
    %198 = vmatpush1.msra.mxu0 0.0
    %199 = vmatprep.subr.mxu0 0.0
    %200 = vmatpush1.msra.mxu0 0.0
    %201 = vmatprep.subr.mxu0 0.0
    %202 = vmatpush1.msra.mxu0 0.0
    %203 = vmatprep.subr.mxu0 0.0
    %204 = vmatpush1.msra.mxu0 0.0
    %205 = vmatprep.subr.mxu0 0.0
    %206 = vmatpush1.msra.mxu0 0.0
    %207 = vmatprep.subr.mxu0 0.0
    %208 = vmatpush1.msra.mxu0 0.0
    %209 = vmatprep.subr.mxu0 0.0
    %210 = vmatpush1.msra.mxu0 0.0
    %211 = vmatprep.subr.mxu0 0.0
    %212 = vmatpush1.msra.mxu0 0.0
    %213 = vmatprep.mubr.f32.mxu0 0.0
    %214 = vmatmul.mubr.f32.gmra.mrb[0].mxu0 %v147
    %v215 = vpop.f32.mrb[0].mxu0
    %v216 = vadd.f32 %v143, %v215
    %v217 = vpop.f32.mrb[0].mxu0
    %218 = vdwg.mxu0
    %vm219 = vcmp.ge.s32.totalorder %v121, 32
    %vm220 = vcmp.lt.s32.totalorder %v121, 36
    %vm221 = vmand %vm219, %vm220
    %v222 = vsel %vm221, %v216, -inf
    %vm223 = vcmask 424960
    %v224 = vsel %vm223, %v222, -inf
    %225 = vmax.xlane.f32.xlu0 %v224
    %v226 = vpop.xlane.xlu0 %225
    %v227 = vsub.f32 %v216, %v226
    %v228 = vmul.f32 %v227, 1.442695
    %v229 = vpow.pop %v228
    %v230 = vsel %vm221, %v229, 0.0
    %v231 = vsel %vm223, %v230, 0.0
    %232 = vadd.xlane.f32.xlu0 %v231
    %v233 = vpop.xlane.xlu0 %232
    %v234 = vrcp.pop %v233
    %v235 = vmul.f32 %v230, %v234
    %v236 = vmax.f32 %v216, 0.0
    %v237 = vsel %vm221, %v235, %v216
    %v238 = vsel %vm122, %v236, %v237
    %v239 = vld [vmem:[%s6] sm:$0xff]
    %v240 = vld [vmem:[%s6 + $0x8] sm:$0xff]
    %v241 = vld [vmem:[%s6 + $0x10] sm:$0xff]
    %v242 = vld [vmem:[%s6 + $0x18] sm:$0xff]
    %v243 = vld [vmem:[%s6 + $0x20] sm:$0xff]
    %v244 = vld [vmem:[%s6 + $0x28] sm:$0xff]
    %v245 = vld [vmem:[%s6 + $0x30] sm:$0xf]
    %v246 = vld [vmem:[%s7] sm:$0x1]
    %v248 = vlaneseq
    %v249 = vshrl.u32 %v248, 7
    %v250 = vsub.s32 0, %v249
    %v251 = vrot.slane %v246, %v250
    %v254 = vsel %vm223, %v238, 0
    %vm256 = vcmask 1043456
    %v258 = vsel %vm256, %v245, 0
    %260 = vmatprep.subr.mxu0 0.0
    %261 = vmatpush1.msra.mxu0 %v239
    %262 = vmatprep.subr.mxu0 0.0
    %263 = vmatpush1.msra.mxu0 %v240
    %264 = vmatprep.subr.mxu0 0.0
    %265 = vmatpush1.msra.mxu0 %v241
    %266 = vmatprep.subr.mxu0 0.0
    %267 = vmatpush1.msra.mxu0 %v242
    %268 = vmatprep.subr.mxu0 0.0
    %269 = vmatpush1.msra.mxu0 %v243
    %270 = vmatprep.subr.mxu0 0.0
    %271 = vmatpush1.msra.mxu0 %v244
    %272 = vmatprep.subr.mxu0 0.0
    %273 = vmatpush1.msra.mxu0 %v258
    %274 = vmatprep.subr.mxu0 0.0
    %275 = vmatpush1.msra.mxu0 0.0
    %276 = vmatprep.subr.mxu0 0.0
    %277 = vmatpush1.msra.mxu0 0.0
    %278 = vmatprep.subr.mxu0 0.0
    %279 = vmatpush1.msra.mxu0 0.0
    %280 = vmatprep.subr.mxu0 0.0
    %281 = vmatpush1.msra.mxu0 0.0
    %282 = vmatprep.subr.mxu0 0.0
    %283 = vmatpush1.msra.mxu0 0.0
    %284 = vmatprep.subr.mxu0 0.0
    %285 = vmatpush1.msra.mxu0 0.0
    %286 = vmatprep.subr.mxu0 0.0
    %287 = vmatpush1.msra.mxu0 0.0
    %288 = vmatprep.subr.mxu0 0.0
    %289 = vmatpush1.msra.mxu0 0.0
    %290 = vmatprep.subr.mxu0 0.0
    %291 = vmatpush1.msra.mxu0 0.0
    %292 = vmatprep.subr.mxu0 0.0
    %293 = vmatpush1.msra.mxu0 0.0
    %294 = vmatprep.subr.mxu0 0.0
    %295 = vmatpush1.msra.mxu0 0.0
    %296 = vmatprep.subr.mxu0 0.0
    %297 = vmatpush1.msra.mxu0 0.0
    %298 = vmatprep.subr.mxu0 0.0
    %299 = vmatpush1.msra.mxu0 0.0
    %300 = vmatprep.subr.mxu0 0.0
    %301 = vmatpush1.msra.mxu0 0.0
    %302 = vmatprep.subr.mxu0 0.0
    %303 = vmatpush1.msra.mxu0 0.0
    %304 = vmatprep.subr.mxu0 0.0
    %305 = vmatpush1.msra.mxu0 0.0
    %306 = vmatprep.subr.mxu0 0.0
    %307 = vmatpush1.msra.mxu0 0.0
    %308 = vmatprep.subr.mxu0 0.0
    %309 = vmatpush1.msra.mxu0 0.0
    %310 = vmatprep.subr.mxu0 0.0
    %311 = vmatpush1.msra.mxu0 0.0
    %312 = vmatprep.subr.mxu0 0.0
    %313 = vmatpush1.msra.mxu0 0.0
    %314 = vmatprep.subr.mxu0 0.0
    %315 = vmatpush1.msra.mxu0 0.0
    %316 = vmatprep.subr.mxu0 0.0
    %317 = vmatpush1.msra.mxu0 0.0
    %318 = vmatprep.subr.mxu0 0.0
    %319 = vmatpush1.msra.mxu0 0.0
    %320 = vmatprep.subr.mxu0 0.0
    %321 = vmatpush1.msra.mxu0 0.0
    %322 = vmatprep.subr.mxu0 0.0
    %323 = vmatpush1.msra.mxu0 0.0
    %324 = vmatprep.mubr.f32.mxu0 0.0
    %325 = vmatmul.mubr.f32.gmra.mrb[0].mxu0 %v254
    %v326 = vpop.f32.mrb[0].mxu0
    %v327 = vadd.f32 %v251, %v326
    %v328 = vpop.f32.mrb[0].mxu0
    %329 = vdwg.mxu0
    %vm330 = vcmp.lt.s32.totalorder %v121, 8
    %v331 = vsub.f32 0.0, %v327
    %v332 = vmul.f32 %v331, 1.442695
    %v333 = vpow.pop %v332
    %v334 = vadd.f32 %v333, 1.0
    %v335 = vrcp.pop %v334
    %v336 = vmul.f32 1.0, %v335
    %v337 = vsel %vm330, %v336, %v327
    %338 = vst [vmem:[#allocation2] sm:$0xff] %v337
    %v339 = vld [vmem:[%s1] sm:$0xff]
    %v340 = vld [vmem:[%s1 + $0x8] sm:$0xff]
    %vm341 = vcmask 130048
    %v342 = vsel %vm341, %v339, -inf
    %343 = vmax.xlane.f32.xlu0 %v342
    %v344 = vpop.xlane.xlu0 %343
    %v345 = vsel %vm341, %v340, -inf
    %346 = vmax.xlane.f32.xlu0 %v345
    %v347 = vpop.xlane.xlu0 %346
    %vm348 = vcmp.eq.f32.partialorder %v339, %v344
    %vm349 = vcmp.eq.f32.partialorder %v340, %v347
    %v350 = vsel %vm348, %v121, 16
    %v351 = vsel %vm349, %v121, 16
    %v352 = vsel %vm341, %v350, 2147483647
    %v353 = vand.u32 %v352, 65535
    %v354 = vshra.s32 %v352, 16
    %v355 = vcvt.s32.f32 %v353
    %v356 = vcvt.s32.f32 %v354
    %357 = vmin.xlane.f32.xlu0 %v356
    %v358 = vpop.xlane.xlu0 %357
    %vm359 = vcmp.eq.f32.partialorder %v356, %v358
    %v360 = vsel %vm359, %v355, inf
    %361 = vmin.xlane.f32.xlu0 %v360
    %v362 = vpop.xlane.xlu0 %361
    %v363 = vcvt.f32.s32 %v362
    %v364 = vcvt.f32.s32 %v358
    %v365 = vshll.u32 %v364, 16
    %v366 = vadd.s32 %v365, %v363
    %v367 = vsel %vm341, %v351, 2147483647
    %v368 = vand.u32 %v367, 65535
    %v369 = vshra.s32 %v367, 16
    %v370 = vcvt.s32.f32 %v368
    %v371 = vcvt.s32.f32 %v369
    %372 = vmin.xlane.f32.xlu0 %v371
    %v373 = vpop.xlane.xlu0 %372
    %vm374 = vcmp.eq.f32.partialorder %v371, %v373
    %v375 = vsel %vm374, %v370, inf
    %376 = vmin.xlane.f32.xlu0 %v375
    %v377 = vpop.xlane.xlu0 %376
    %v378 = vcvt.f32.s32 %v377
    %v379 = vcvt.f32.s32 %v373
    %v380 = vshll.u32 %v379, 16
    %v381 = vadd.s32 %v380, %v378
    %vm382 = vcmp.eq.s32.totalorder %v121, %v366
    %vm383 = vcmp.eq.s32.totalorder %v121, %v381
    %v384 = vsel %vm382, 1.0, 0.0
    %v385 = vsel %vm383, 1.0, 0.0
    %386 = vst.msk [vmem:[#allocation4] sm:$0xff] %vm341, %v384
    %387 = vst.msk [vmem:[#allocation4 + $0x8] sm:$0xff] %vm341, %v385
    %v388 = vsel %vm382, %v339, 0.0
    %v389 = vsel %vm383, %v340, 0.0
    %390 = vst.msk [vmem:[#allocation6] sm:$0xff] %vm341, %v388
    %391 = vst.msk [vmem:[#allocation6 + $0x8] sm:$0xff] %vm341, %v389
    // Predicated region
    $region34: #{tpu_custom_call.1} parent=1 // pred_check
      _
    $region35: #{tpu_custom_call.1} parent=1 // pred_check_branch
      %393 = sbr.rel (0) target = $region37
    $region36: #{tpu_custom_call.1} parent=1 // pred_region
      %s395 = ssub.s32 128, 128
      %396 = vsyncadd [#allocation3], %s395
      %s398 = sshll.u32 [#allocation2], 4
      %s399 = int_to_ptr.vmem [resolvable:$true] %s398
      %401 = dma.vmem_to_hbm [thread:$0]  %s399, 128, %s8, [#allocation3]
    $region37: #{tpu_custom_call.1} parent=1 // pred_fallthru
      _
    // Predicated region
    $region38: #{tpu_custom_call.1} parent=1 // pred_check
      _
    $region39: #{tpu_custom_call.1} parent=1 // pred_check_branch
      %403 = sbr.rel (0) target = $region41
    $region40: #{tpu_custom_call.1} parent=1 // pred_region
      %s405 = ssub.s32 256, 256
      %406 = vsyncadd [#allocation5], %s405
      %s407 = sshll.u32 [#allocation4], 4
      %s408 = int_to_ptr.vmem [resolvable:$true] %s407
      %413 = dma.vmem_to_hbm [thread:$0]  %s408, 256, %s9, [#allocation5], 128, 128, 8
    $region41: #{tpu_custom_call.1} parent=1 // pred_fallthru
      _
    // Predicated region
    $region42: #{tpu_custom_call.1} parent=1 // pred_check
      _
    $region43: #{tpu_custom_call.1} parent=1 // pred_check_branch
      %415 = sbr.rel (0) target = $region45
    $region44: #{tpu_custom_call.1} parent=1 // pred_region
      %s417 = ssub.s32 256, 256
      %418 = vsyncadd [#allocation5], %s417
      %s419 = sshll.u32 [#allocation6], 4
      %s420 = int_to_ptr.vmem [resolvable:$true] %s419
      %425 = dma.vmem_to_hbm [thread:$0]  %s420, 256, %s10, [#allocation5], 128, 128, 8
    $region45: #{tpu_custom_call.1} parent=1 // pred_fallthru
      _
    // Predicated region
    $region46: #{tpu_custom_call.1} parent=1 // pred_check
      _
    $region47: #{tpu_custom_call.1} parent=1 // pred_check_branch
      %427 = sbr.rel (0) target = $region49
    $region48: #{tpu_custom_call.1} parent=1 // pred_region
      %428 = dma.done [#allocation3], 128
    $region49: #{tpu_custom_call.1} parent=1 // pred_fallthru
      _
    // Predicated region
    $region50: #{tpu_custom_call.1} parent=1 // pred_check
      _
    $region51: #{tpu_custom_call.1} parent=1 // pred_check_branch
      %430 = sbr.rel (0) target = $region53
    $region52: #{tpu_custom_call.1} parent=1 // pred_region
      %431 = dma.done [#allocation5], 256
    $region53: #{tpu_custom_call.1} parent=1 // pred_fallthru
      _
    // Predicated region
    $region54: #{tpu_custom_call.1} parent=1 // pred_check
      _
    $region55: #{tpu_custom_call.1} parent=1 // pred_check_branch
      %433 = sbr.rel (0) target = $region57
    $region56: #{tpu_custom_call.1} parent=1 // pred_region
      %434 = dma.done [#allocation5], 256
    $region57: #{tpu_custom_call.1} parent=1 // pred_fallthru
      _
    %435 = vsyncpa [#allocation3], 1
    %436 = vsyncpa [#allocation5], 1

</llo_original>
